<compile_context>
chip_gen: v7x
topology: tpu7x:2x2x1
jax: 0.10.0
libtpu: 0.0.40
codegen_flags: <defaults>
</compile_context>

<pallas_src>
import functools
import math

import jax
import jax.numpy as jnp
from jax.experimental import pallas as pl
from jax.experimental.pallas import tpu as pltpu


def _round_up(x, m):
    return ((x + m - 1) // m) * m


def _self_attn_kernel(h_ref, a_ref, bt_ref, o_ref, m_sc, l_sc, acc_sc,
                      *, n_valid, tile_n):
    i = pl.program_id(0)

    @pl.when(i == 0)
    def _():
        m_sc[...] = jnp.full_like(m_sc, -jnp.inf)
        l_sc[...] = jnp.zeros_like(l_sc)
        acc_sc[...] = jnp.zeros_like(acc_sc)

    h = h_ref[...].astype(jnp.float32)        # (tile_n, dim_pad)
    a = a_ref[...].astype(jnp.float32)        # (dim_pad, da_pad)
    bt = bt_ref[...].astype(jnp.float32)      # (1, da_pad)

    # e = tanh(h @ a) @ b  — second (width-1) matmul replaced by VPU mult + lane reduce.
    ha = jnp.tanh(jnp.dot(h, a, preferred_element_type=jnp.float32))  # (tile_n, da_pad)
    e = jnp.sum(ha * bt, axis=1, keepdims=True)                       # (tile_n, 1)

    # Mask rows beyond the true N (zero-padded rows of the last tile).
    row = i * tile_n + jax.lax.broadcasted_iota(jnp.int32, (tile_n, 1), 0)
    e = jnp.where(row < n_valid, e, -jnp.inf)

    # Online softmax update (numerically stable across tiles).
    m_prev = m_sc[...]
    m_new = jnp.maximum(m_prev, jnp.max(e, axis=0, keepdims=True))
    scale = jnp.exp(m_prev - m_new)
    p = jnp.exp(e - m_new)                                            # masked rows -> 0
    l_sc[...] = scale * l_sc[...] + jnp.sum(p, axis=0, keepdims=True)
    acc_sc[...] = scale * acc_sc[...] + jnp.sum(p * h, axis=0, keepdims=True)
    m_sc[...] = m_new

    @pl.when(i == pl.num_programs(0) - 1)
    def _():
        l = l_sc[...]
        inv_l = pl.reciprocal(l, approx=True)
        inv_l = inv_l * (2.0 - l * inv_l)   # one Newton step -> ~f32-exact, still EUP
        o_ref[...] = (acc_sc[...] * inv_l).astype(o_ref.dtype)


def self_attention_forward(h, a, b, *, max_tile_n=512):
    """h: (N, dim), a: (dim, da), b: (da, 1) -> (dim,)"""
    N, dim = h.shape
    da = a.shape[1]

    dim_pad = _round_up(dim, 128)
    da_pad = _round_up(da, 128)

    # N tile: multiple of 8 sublanes, capped so double-buffered h tiles stay well
    # inside the scoped VMEM limit (conservative for v7x's smaller 64 MiB VMEM).
    vmem_budget = 8 * 1024 * 1024
    cap = max(8, (vmem_budget // (2 * dim_pad * 4)) // 8 * 8)
    tile_n = max(8, min(max_tile_n, cap, _round_up(N, 8)))
    n_pad = _round_up(N, tile_n)
    grid = (n_pad // tile_n,)

    h_pad = jnp.pad(h, ((0, n_pad - N), (0, dim_pad - dim)))
    a_pad = jnp.pad(a, ((0, dim_pad - dim), (0, da_pad - da)))
    bt_pad = jnp.pad(b.T, ((0, 0), (0, da_pad - da)))     # (1, da_pad), lane-dense

    kernel = functools.partial(_self_attn_kernel, n_valid=N, tile_n=tile_n)

    out = pl.pallas_call(
        kernel,
        out_shape=jax.ShapeDtypeStruct((1, dim_pad), h.dtype),
        grid_spec=pltpu.PrefetchScalarGridSpec(
            num_scalar_prefetch=0,
            grid=grid,
            in_specs=[
                pl.BlockSpec((tile_n, dim_pad), lambda i: (i, 0)),
                pl.BlockSpec((dim_pad, da_pad), lambda i: (0, 0)),
                pl.BlockSpec((1, da_pad), lambda i: (0, 0)),
            ],
            out_specs=pl.BlockSpec((1, dim_pad), lambda i: (0, 0)),
            scratch_shapes=[
                pltpu.VMEM((1, 1), jnp.float32),        # running max m
                pltpu.VMEM((1, 1), jnp.float32),        # running softmax denom l
                pltpu.VMEM((1, dim_pad), jnp.float32),  # running weighted sum acc
            ],
        ),
        compiler_params=pltpu.CompilerParams(
            dimension_semantics=("arbitrary",),  # softmax reduction axis over N
        ),
    )(h_pad, a_pad, bt_pad)
    return out[0, :dim]


def xavier_uniform(key, shape, gain):
    fan_in, fan_out = shape[0], shape[1]
    bound = gain * math.sqrt(6.0 / (fan_in + fan_out))
    return jax.random.uniform(key, shape, jnp.float32, -bound, bound)


def reference_forward(h, a, b):
    hp = jax.lax.Precision.HIGHEST
    e = jnp.matmul(jnp.tanh(jnp.matmul(h, a, precision=hp)), b, precision=hp)[:, 0]
    attn = jax.nn.softmax(e)
    return jnp.matmul(attn, h, precision=hp)


if __name__ == "__main__":
    # Small shapes consistent with the module's forward: h is (N, dim).
    N, dim, da = 8, 32, 16
    key = jax.random.PRNGKey(0)
    k_h, k_a, k_b = jax.random.split(key, 3)

    h = jax.random.normal(k_h, (N, dim), jnp.float32)
    a = xavier_uniform(k_a, (dim, da), gain=1.414)
    b = xavier_uniform(k_b, (da, 1), gain=1.414)
    # NOTE: dropout / alpha params in __init__ are unused by forward().

    out = jax.block_until_ready(self_attention_forward(h, a, b))
    ref = reference_forward(h, a, b)
    assert out.shape == (dim,)
    assert jnp.allclose(out, ref, atol=1e-5, rtol=1e-5), (out, ref)

    # Second, larger ragged case: exercises multiple N tiles + masked partial
    # last tile in the online-softmax accumulator path.
    N2, dim2, da2 = 300, 96, 40
    k_h2, k_a2, k_b2 = jax.random.split(jax.random.PRNGKey(1), 3)
    h2 = jax.random.normal(k_h2, (N2, dim2), jnp.float32)
    a2 = xavier_uniform(k_a2, (dim2, da2), gain=1.414)
    b2 = xavier_uniform(k_b2, (da2, 1), gain=1.414)

    out2 = jax.block_until_ready(self_attention_forward(h2, a2, b2, max_tile_n=128))
    ref2 = reference_forward(h2, a2, b2)
    assert out2.shape == (dim2,)
    assert jnp.allclose(out2, ref2, atol=1e-4, rtol=1e-4), (out2, ref2)

    print("KERNEL_OK")
</pallas_src>

<mosaic_0001>
module attributes {stable_mosaic.version = 11 : i64} {
  func.func @_self_attn_kernel(%arg0: i32, %arg1: memref<8x128xf32, #tpu.memory_space<vmem>>, %arg2: memref<128x128xf32, #tpu.memory_space<vmem>>, %arg3: memref<1x128xf32, #tpu.memory_space<vmem>>, %arg4: memref<1x128xf32, #tpu.memory_space<vmem>>, %arg5: memref<1x1xf32, #tpu.memory_space<vmem>>, %arg6: memref<1x1xf32, #tpu.memory_space<vmem>>, %arg7: memref<1x128xf32, #tpu.memory_space<vmem>>) attributes {dimension_semantics = [#tpu.dimension_semantics<arbitrary>], iteration_bounds = array<i64: 1>, scalar_prefetch = 0 : i64, scratch_operands = 3 : i64, tpu.core_type = #tpu.core_type<tc>, window_params = [{transform_indices = @transform_0, window_bounds = array<i64: 8, 128>}, {pipeline_mode = #tpu.pipeline_mode<synchronous>, transform_indices = @transform_1, window_bounds = array<i64: 128, 128>}, {pipeline_mode = #tpu.pipeline_mode<synchronous>, transform_indices = @transform_2, window_bounds = array<i64: 1, 128>}, {pipeline_mode = #tpu.pipeline_mode<synchronous>, transform_indices = @transform_3, window_bounds = array<i64: 1, 128>}]} {
    %c0_i32 = arith.constant 0 : i32
    %0 = arith.cmpi eq, %arg0, %c0_i32 : i32
    %1 = arith.extui %0 : i1 to i32
    %c0_i32_0 = arith.constant 0 : i32
    %2 = arith.cmpi ne, %1, %c0_i32_0 : i32
    scf.if %2 {
      %cst_26 = arith.constant 0xFF800000 : f32
      %48 = vector.broadcast %cst_26 : f32 to vector<1x1xf32>
      %c0_27 = arith.constant 0 : index
      %c0_28 = arith.constant 0 : index
      %49 = vector.load %arg5[%c0_27, %c0_28] : memref<1x1xf32, #tpu.memory_space<vmem>>, vector<1x1xf32>
      tpu.vector_store %arg5[%c0_27, %c0_28], %48 {strides = array<i32>} : memref<1x1xf32, #tpu.memory_space<vmem>>, vector<1x1xf32>,
      %cst_29 = arith.constant 0.000000e+00 : f32
      %50 = vector.broadcast %cst_29 : f32 to vector<1x1xf32>
      %c0_30 = arith.constant 0 : index
      %c0_31 = arith.constant 0 : index
      %51 = vector.load %arg6[%c0_30, %c0_31] : memref<1x1xf32, #tpu.memory_space<vmem>>, vector<1x1xf32>
      tpu.vector_store %arg6[%c0_30, %c0_31], %50 {strides = array<i32>} : memref<1x1xf32, #tpu.memory_space<vmem>>, vector<1x1xf32>,
      %cst_32 = arith.constant 0.000000e+00 : f32
      %52 = vector.broadcast %cst_32 : f32 to vector<1x128xf32>
      %c0_33 = arith.constant 0 : index
      %c0_34 = arith.constant 0 : index
      %53 = vector.load %arg7[%c0_33, %c0_34] : memref<1x128xf32, #tpu.memory_space<vmem>>, vector<1x128xf32>
      tpu.vector_store %arg7[%c0_33, %c0_34], %52 {strides = array<i32>} : memref<1x128xf32, #tpu.memory_space<vmem>>, vector<1x128xf32>,
    } else {
    }
    %c0 = arith.constant 0 : index
    %c0_1 = arith.constant 0 : index
    %3 = vector.load %arg1[%c0, %c0_1] : memref<8x128xf32, #tpu.memory_space<vmem>>, vector<8x128xf32>
    %c0_2 = arith.constant 0 : index
    %c0_3 = arith.constant 0 : index
    %4 = vector.load %arg2[%c0_2, %c0_3] : memref<128x128xf32, #tpu.memory_space<vmem>>, vector<128x128xf32>
    %c0_4 = arith.constant 0 : index
    %c0_5 = arith.constant 0 : index
    %5 = vector.load %arg3[%c0_4, %c0_5] : memref<1x128xf32, #tpu.memory_space<vmem>>, vector<1x128xf32>
    %cst = arith.constant dense<0.000000e+00> : vector<8x128xf32>
    %6 = tpu.matmul %3, %4, %cst {dimension_numbers = #tpu.dot_dimension_numbers<[1], [0], [0], [1], [0, 0, 1, 1], [], []>} : vector<8x128xf32>, vector<128x128xf32>, vector<8x128xf32> -> vector<8x128xf32>
    %7 = math.tanh %6 : vector<8x128xf32>
    %8 = vector.broadcast %5 : vector<1x128xf32> to vector<8x128xf32>
    %9 = arith.mulf %7, %8 : vector<8x128xf32>
    %cst_6 = arith.constant dense<0.000000e+00> : vector<8xf32>
    %10 = vector.multi_reduction <add>, %9, %cst_6 [1] : vector<8x128xf32> to vector<8xf32>
    %11 = vector.shape_cast %10 : vector<8xf32> to vector<8x1xf32>
    %c8_i32 = arith.constant 8 : i32
    %12 = arith.muli %arg0, %c8_i32 : i32
    %13 = tpu.iota {dimensions = array<i32: 0>} : vector<8x1xi32>
    %14 = vector.broadcast %12 : i32 to vector<8x1xi32>
    %15 = arith.addi %14, %13 : vector<8x1xi32>
    %c8_i32_7 = arith.constant 8 : i32
    %16 = vector.broadcast %c8_i32_7 : i32 to vector<8x1xi32>
    %17 = arith.cmpi slt, %15, %16 : vector<8x1xi32>
    %cst_8 = arith.constant 0xFF800000 : f32
    %18 = vector.broadcast %cst_8 : f32 to vector<8x1xf32>
    %19 = arith.select %17, %11, %18 : vector<8x1xi1>, vector<8x1xf32>
    %c0_9 = arith.constant 0 : index
    %c0_10 = arith.constant 0 : index
    %20 = vector.load %arg5[%c0_9, %c0_10] : memref<1x1xf32, #tpu.memory_space<vmem>>, vector<1x1xf32>
    %cst_11 = arith.constant dense<0xFF800000> : vector<1xf32>
    %21 = vector.multi_reduction <maximumf>, %19, %cst_11 [0] : vector<8x1xf32> to vector<1xf32>
    %22 = vector.shape_cast %21 : vector<1xf32> to vector<1x1xf32>
    %23 = arith.maximumf %20, %22 : vector<1x1xf32>
    %24 = arith.subf %20, %23 : vector<1x1xf32>
    %25 = math.exp %24 : vector<1x1xf32>
    %26 = vector.broadcast %23 : vector<1x1xf32> to vector<8x1xf32>
    %27 = arith.subf %19, %26 : vector<8x1xf32>
    %28 = math.exp %27 : vector<8x1xf32>
    %c0_12 = arith.constant 0 : index
    %c0_13 = arith.constant 0 : index
    %29 = vector.load %arg6[%c0_12, %c0_13] : memref<1x1xf32, #tpu.memory_space<vmem>>, vector<1x1xf32>
    %30 = arith.mulf %25, %29 : vector<1x1xf32>
    %cst_14 = arith.constant dense<0.000000e+00> : vector<1xf32>
    %31 = vector.multi_reduction <add>, %28, %cst_14 [0] : vector<8x1xf32> to vector<1xf32>
    %32 = vector.shape_cast %31 : vector<1xf32> to vector<1x1xf32>
    %33 = arith.addf %30, %32 : vector<1x1xf32>
    %c0_15 = arith.constant 0 : index
    %c0_16 = arith.constant 0 : index
    %34 = vector.load %arg6[%c0_15, %c0_16] : memref<1x1xf32, #tpu.memory_space<vmem>>, vector<1x1xf32>
    tpu.vector_store %arg6[%c0_15, %c0_16], %33 {strides = array<i32>} : memref<1x1xf32, #tpu.memory_space<vmem>>, vector<1x1xf32>,
    %c0_17 = arith.constant 0 : index
    %c0_18 = arith.constant 0 : index
    %35 = vector.load %arg7[%c0_17, %c0_18] : memref<1x128xf32, #tpu.memory_space<vmem>>, vector<1x128xf32>
    %36 = vector.broadcast %25 : vector<1x1xf32> to vector<1x128xf32>
    %37 = arith.mulf %36, %35 : vector<1x128xf32>
    %38 = vector.broadcast %28 : vector<8x1xf32> to vector<8x128xf32>
    %39 = arith.mulf %38, %3 : vector<8x128xf32>
    %cst_19 = arith.constant dense<0.000000e+00> : vector<128xf32>
    %40 = vector.multi_reduction <add>, %39, %cst_19 [0] : vector<8x128xf32> to vector<128xf32>
    %41 = vector.shape_cast %40 : vector<128xf32> to vector<1x128xf32>
    %42 = arith.addf %37, %41 : vector<1x128xf32>
    %c0_20 = arith.constant 0 : index
    %c0_21 = arith.constant 0 : index
    %43 = vector.load %arg7[%c0_20, %c0_21] : memref<1x128xf32, #tpu.memory_space<vmem>>, vector<1x128xf32>
    tpu.vector_store %arg7[%c0_20, %c0_21], %42 {strides = array<i32>} : memref<1x128xf32, #tpu.memory_space<vmem>>, vector<1x128xf32>,
    %c0_22 = arith.constant 0 : index
    %c0_23 = arith.constant 0 : index
    %44 = vector.load %arg5[%c0_22, %c0_23] : memref<1x1xf32, #tpu.memory_space<vmem>>, vector<1x1xf32>
    tpu.vector_store %arg5[%c0_22, %c0_23], %23 {strides = array<i32>} : memref<1x1xf32, #tpu.memory_space<vmem>>, vector<1x1xf32>,
    %c0_i32_24 = arith.constant 0 : i32
    %45 = arith.cmpi eq, %arg0, %c0_i32_24 : i32
    %46 = arith.extui %45 : i1 to i32
    %c0_i32_25 = arith.constant 0 : i32
    %47 = arith.cmpi ne, %46, %c0_i32_25 : i32
    scf.if %47 {
      %c0_26 = arith.constant 0 : index
      %c0_27 = arith.constant 0 : index
      %48 = vector.load %arg6[%c0_26, %c0_27] : memref<1x1xf32, #tpu.memory_space<vmem>>, vector<1x1xf32>
      %49 = tpu.reciprocal %48 {approx = true} : vector<1x1xf32> -> vector<1x1xf32>
      %50 = arith.mulf %48, %49 : vector<1x1xf32>
      %cst_28 = arith.constant 2.000000e+00 : f32
      %51 = vector.broadcast %cst_28 : f32 to vector<1x1xf32>
      %52 = arith.subf %51, %50 : vector<1x1xf32>
      %53 = arith.mulf %49, %52 : vector<1x1xf32>
      %c0_29 = arith.constant 0 : index
      %c0_30 = arith.constant 0 : index
      %54 = vector.load %arg7[%c0_29, %c0_30] : memref<1x128xf32, #tpu.memory_space<vmem>>, vector<1x128xf32>
      %55 = vector.broadcast %53 : vector<1x1xf32> to vector<1x128xf32>
      %56 = arith.mulf %54, %55 : vector<1x128xf32>
      %c0_31 = arith.constant 0 : index
      %c0_32 = arith.constant 0 : index
      %57 = vector.load %arg4[%c0_31, %c0_32] : memref<1x128xf32, #tpu.memory_space<vmem>>, vector<1x128xf32>
      tpu.vector_store %arg4[%c0_31, %c0_32], %56 {strides = array<i32>} : memref<1x128xf32, #tpu.memory_space<vmem>>, vector<1x128xf32>,
    } else {
    }
    return
  }
  func.func @transform_0(%arg0: i32) -> (i32, i32) {
    %c0_i32 = arith.constant 0 : i32
    %c0_i32_0 = arith.constant 0 : i32
    return %arg0, %c0_i32 : i32, i32
  }
  func.func @transform_1(%arg0: i32) -> (i32, i32) {
    %c0_i32 = arith.constant 0 : i32
    %c0_i32_0 = arith.constant 0 : i32
    %c0_i32_1 = arith.constant 0 : i32
    return %c0_i32, %c0_i32_0 : i32, i32
  }
  func.func @transform_2(%arg0: i32) -> (i32, i32) {
    %c0_i32 = arith.constant 0 : i32
    %c0_i32_0 = arith.constant 0 : i32
    %c0_i32_1 = arith.constant 0 : i32
    return %c0_i32, %c0_i32_0 : i32, i32
  }
  func.func @transform_3(%arg0: i32) -> (i32, i32) {
    %c0_i32 = arith.constant 0 : i32
    %c0_i32_0 = arith.constant 0 : i32
    %c0_i32_1 = arith.constant 0 : i32
    return %c0_i32, %c0_i32_0 : i32, i32
  }
}

</mosaic_0001>

<llo_original>
// kernel: tpu_custom_call.1
$region0: #{tpu_custom_call.1}
  #allocation0 [shape = 'u32[]', space=smem, size = 0x4, offset = 0x4, fixed_abs, tag = 'smem constant byte address 0x4 - core index']
  #allocation1 [shape = 'u32[144,128]{1,0:T(1,128)}', space=vmem, size = 0x12000, scoped, tag = 'internal scratch']
  #allocation2 [shape = 'f32[1,1]{1,0:T(1,128)}', space=vmem, size = 0x200, scoped, tag = 'scratch operand']
  #allocation3 [shape = 'f32[1,1]{1,0:T(1,128)}', space=vmem, size = 0x200, scoped, tag = 'scratch operand']
  #allocation4 [shape = 'f32[1,128]{1,0:T(1,128)}', space=vmem, size = 0x200, scoped, tag = 'scratch operand']
  %s0 = inlined_call_operand.hbm [shape: f32[8,128], index: 0, kind: input, shape index: {}]
  %s1 = inlined_call_operand.hbm [shape: f32[128,128], index: 1, kind: input, shape index: {}]
  %s2 = inlined_call_operand.vmem [shape: f32[1,128], index: 2, kind: input, shape index: {}]
  %s3 = inlined_call_operand.hbm [shape: f32[1,128], index: 3, kind: output, shape index: {}]
  %s4 = sld [smem:[#allocation0]]
  $region38: #{tpu_custom_call.1} parent=0
    _
  %s6 = ssub.s32 1, %s4
  %s7 = scalar_select 0, %s6, %s4
  $region1: #{tpu_custom_call.1} parent=0
    #allocation5 [shape = 'u8[4096]{0}', space=vmem, size = 0x1000, scoped, tag = 'input window, operand 0, single buffered']
    #allocation6 [shape = 's32[1]{0}', space=sflag, size = 0x4, scoped, tag = 'scoped memory for tpu_custom_call.1']
    #allocation7 [shape = 's32[1]{0}', space=sflag, size = 0x4, scoped, tag = 'scoped memory for tpu_custom_call.1']
    #allocation8 [shape = 'u8[65536]{0}', space=vmem, size = 0x10000, scoped, tag = 'input window, operand 1, single buffered']
    #allocation9 [shape = 's32[1]{0}', space=sflag, size = 0x4, scoped, tag = 'scoped memory for tpu_custom_call.1']
    #allocation10 [shape = 'u8[512]{0}', space=vmem, size = 0x400, scoped, tag = 'output window, operand 0, single buffered']
    %8 = vsyncpa [#allocation6], 0
    %9 = vsyncpa [#allocation9], 0
    %10 = vsyncpa [#allocation7], 0
    // Predicated region
    $region2: #{tpu_custom_call.1} parent=1 // pred_check
      _
    $region3: #{tpu_custom_call.1} parent=1 // pred_check_branch
      %12 = sbr.rel (0) target = $region5
    $region4: #{tpu_custom_call.1} parent=1 // pred_region
      %s14 = ssub.s32 128, 128
      %15 = vsyncadd [#allocation6], %s14
      %s17 = sshll.u32 [#allocation5], 4
      %s18 = int_to_ptr.vmem [resolvable:$true] %s17
      %20 = dma.hbm_to_vmem [thread:$0]  %s0, 128, %s18, [#allocation6]
    $region5: #{tpu_custom_call.1} parent=1 // pred_fallthru
      _
    // Predicated region
    $region6: #{tpu_custom_call.1} parent=1 // pred_check
      _
    $region7: #{tpu_custom_call.1} parent=1 // pred_check_branch
      %22 = sbr.rel (0) target = $region9
    $region8: #{tpu_custom_call.1} parent=1 // pred_region
      %s24 = ssub.s32 2048, 2048
      %25 = vsyncadd [#allocation9], %s24
      %s26 = sshll.u32 [#allocation8], 4
      %s27 = int_to_ptr.vmem [resolvable:$true] %s26
      %32 = dma.hbm_to_vmem [thread:$0]  %s1, 2048, %s27, [#allocation9], 128, 128, 8
    $region9: #{tpu_custom_call.1} parent=1 // pred_fallthru
      _
    // Predicated region
    $region10: #{tpu_custom_call.1} parent=1 // pred_check
      _
    $region11: #{tpu_custom_call.1} parent=1 // pred_check_branch
      %34 = sbr.rel (0) target = $region13
    $region12: #{tpu_custom_call.1} parent=1 // pred_region
      _
    $region13: #{tpu_custom_call.1} parent=1 // pred_fallthru
      _
    // Predicated region
    $region14: #{tpu_custom_call.1} parent=1 // pred_check
      _
    $region15: #{tpu_custom_call.1} parent=1 // pred_check_branch
      %36 = sbr.rel (0) target = $region17
    $region16: #{tpu_custom_call.1} parent=1 // pred_region
      %37 = dma.done [#allocation6], 128
    $region17: #{tpu_custom_call.1} parent=1 // pred_fallthru
      _
    // Predicated region
    $region18: #{tpu_custom_call.1} parent=1 // pred_check
      _
    $region19: #{tpu_custom_call.1} parent=1 // pred_check_branch
      %39 = sbr.rel (0) target = $region21
    $region20: #{tpu_custom_call.1} parent=1 // pred_region
      %40 = dma.done [#allocation9], 2048
    $region21: #{tpu_custom_call.1} parent=1 // pred_fallthru
      _
    %p41 = scmp.eq.s32.totalorder 0, 0
    // Predicated region
    $region22: #{tpu_custom_call.1} parent=1 // pred_check
      %p42 = pneg %p41
    $region23: #{tpu_custom_call.1} parent=1 // pred_check_branch
      %44 = sbr.rel (%p42) target = $region25
    $region24: #{tpu_custom_call.1} parent=1 // pred_region
      %vm45 = vcmask 0
      %46 = vst.msk [vmem:[#allocation2] sm:$0x1] %vm45, -inf
      %47 = vst.msk [vmem:[#allocation3] sm:$0x1] %vm45, 0.0
      %48 = vst [vmem:[#allocation4] sm:$0x1] 0.0
    $region25: #{tpu_custom_call.1} parent=1 // pred_fallthru
      _
    %v49 = vld [vmem:[#allocation5] sm:$0xff]
    %v50 = vld [vmem:[#allocation8] sm:$0xff]
    %v51 = vld [vmem:[#allocation8 + $0x8] sm:$0xff]
    %v52 = vld [vmem:[#allocation8 + $0x10] sm:$0xff]
    %v53 = vld [vmem:[#allocation8 + $0x18] sm:$0xff]
    %v54 = vld [vmem:[#allocation8 + $0x20] sm:$0xff]
    %v55 = vld [vmem:[#allocation8 + $0x28] sm:$0xff]
    %v56 = vld [vmem:[#allocation8 + $0x30] sm:$0xff]
    %v57 = vld [vmem:[#allocation8 + $0x38] sm:$0xff]
    %v58 = vld [vmem:[#allocation8 + $0x40] sm:$0xff]
    %v59 = vld [vmem:[#allocation8 + $0x48] sm:$0xff]
    %v60 = vld [vmem:[#allocation8 + $0x50] sm:$0xff]
    %v61 = vld [vmem:[#allocation8 + $0x58] sm:$0xff]
    %v62 = vld [vmem:[#allocation8 + $0x60] sm:$0xff]
    %v63 = vld [vmem:[#allocation8 + $0x68] sm:$0xff]
    %v64 = vld [vmem:[#allocation8 + $0x70] sm:$0xff]
    %v65 = vld [vmem:[#allocation8 + $0x78] sm:$0xff]
    %v66 = vld [vmem:[%s2] sm:$0x1]
    %67 = vmatprep.subr.mxu0 0.0
    %68 = vmatpush1.msra.mxu0 %v50
    %69 = vmatprep.subr.mxu0 0.0
    %70 = vmatpush1.msra.mxu0 %v51
    %71 = vmatprep.subr.mxu0 0.0
    %72 = vmatpush1.msra.mxu0 %v52
    %73 = vmatprep.subr.mxu0 0.0
    %74 = vmatpush1.msra.mxu0 %v53
    %75 = vmatprep.subr.mxu0 0.0
    %76 = vmatpush1.msra.mxu0 %v54
    %77 = vmatprep.subr.mxu0 0.0
    %78 = vmatpush1.msra.mxu0 %v55
    %79 = vmatprep.subr.mxu0 0.0
    %80 = vmatpush1.msra.mxu0 %v56
    %81 = vmatprep.subr.mxu0 0.0
    %82 = vmatpush1.msra.mxu0 %v57
    %83 = vmatprep.subr.mxu0 0.0
    %84 = vmatpush1.msra.mxu0 %v58
    %85 = vmatprep.subr.mxu0 0.0
    %86 = vmatpush1.msra.mxu0 %v59
    %87 = vmatprep.subr.mxu0 0.0
    %88 = vmatpush1.msra.mxu0 %v60
    %89 = vmatprep.subr.mxu0 0.0
    %90 = vmatpush1.msra.mxu0 %v61
    %91 = vmatprep.subr.mxu0 0.0
    %92 = vmatpush1.msra.mxu0 %v62
    %93 = vmatprep.subr.mxu0 0.0
    %94 = vmatpush1.msra.mxu0 %v63
    %95 = vmatprep.subr.mxu0 0.0
    %96 = vmatpush1.msra.mxu0 %v64
    %97 = vmatprep.subr.mxu0 0.0
    %98 = vmatpush1.msra.mxu0 %v65
    %99 = vmatprep.subr.mxu0 0.0
    %100 = vmatpush1.msra.mxu0 0.0
    %101 = vmatprep.subr.mxu0 0.0
    %102 = vmatpush1.msra.mxu0 0.0
    %103 = vmatprep.subr.mxu0 0.0
    %104 = vmatpush1.msra.mxu0 0.0
    %105 = vmatprep.subr.mxu0 0.0
    %106 = vmatpush1.msra.mxu0 0.0
    %107 = vmatprep.subr.mxu0 0.0
    %108 = vmatpush1.msra.mxu0 0.0
    %109 = vmatprep.subr.mxu0 0.0
    %110 = vmatpush1.msra.mxu0 0.0
    %111 = vmatprep.subr.mxu0 0.0
    %112 = vmatpush1.msra.mxu0 0.0
    %113 = vmatprep.subr.mxu0 0.0
    %114 = vmatpush1.msra.mxu0 0.0
    %115 = vmatprep.subr.mxu0 0.0
    %116 = vmatpush1.msra.mxu0 0.0
    %117 = vmatprep.subr.mxu0 0.0
    %118 = vmatpush1.msra.mxu0 0.0
    %119 = vmatprep.subr.mxu0 0.0
    %120 = vmatpush1.msra.mxu0 0.0
    %121 = vmatprep.subr.mxu0 0.0
    %122 = vmatpush1.msra.mxu0 0.0
    %123 = vmatprep.subr.mxu0 0.0
    %124 = vmatpush1.msra.mxu0 0.0
    %125 = vmatprep.subr.mxu0 0.0
    %126 = vmatpush1.msra.mxu0 0.0
    %127 = vmatprep.subr.mxu0 0.0
    %128 = vmatpush1.msra.mxu0 0.0
    %129 = vmatprep.subr.mxu0 0.0
    %130 = vmatpush1.msra.mxu0 0.0
    %131 = vmatprep.mubr.f32.mxu0 0.0
    %132 = vmatmul.mubr.f32.gmra.mrb[0].mxu0 %v49
    %v133 = vpop.f32.mrb[0].mxu0
    %v134 = vadd.f32 0.0, %v133
    %v135 = vpop.f32.mrb[0].mxu0
    %136 = vdwg.mxu0
    %v137 = vtanh.pop %v134
    %v139 = vlaneseq
    %v140 = vshrl.u32 %v139, 7
    %v141 = vsub.s32 0, %v140
    %v142 = vrot.slane %v66, %v141
    %v144 = vmul.f32 %v137, %v142
    %145 = vadd.xlane.f32.xlu0 %v144
    %v146 = vpop.xlane.xlu0 %145
    %s147 = smul.u32 0, 8
    %v148 = vlaneseq
    %v149 = vshrl.u32 %v148, 7
    %v150 = vstv %s147
    %v151 = vadd.s32 %v150, %v149
    %vm152 = vcmp.lt.s32.totalorder %v151, 8
    %v153 = vsel %vm152, %v146, -inf
    %v154 = vld [vmem:[#allocation2] sm:$0x1]
    %v155 = vrot.slane %v153, 4
    %v156 = vmax.f32 %v153, %v155
    %v157 = vrot.slane %v156, 2
    %v158 = vmax.f32 %v156, %v157
    %v159 = vrot.slane %v158, 1
    %v160 = vmax.f32 %v158, %v159
    %v161 = vmax.f32 %v154, %v160
    %v162 = vsub.f32 %v154, %v161
    %v163 = vmul.f32 %v162, 1.442695
    %v164 = vpow.pop %v163
    %v166 = vlaneseq
    %v167 = vshrl.u32 %v166, 7
    %v168 = vsub.s32 0, %v167
    %v169 = vrot.slane %v161, %v168
    %v171 = vsub.f32 %v153, %v169
    %v172 = vmul.f32 %v171, 1.442695
    %v173 = vpow.pop %v172
    %v174 = vld [vmem:[#allocation3] sm:$0x1]
    %v175 = vmul.f32 %v164, %v174
    %vm176 = vcmask 7168
    %v177 = vsel %vm176, %v173, 0.0
    %v178 = vrot.slane %v177, 4
    %v179 = vadd.f32 %v177, %v178
    %v180 = vrot.slane %v179, 2
    %v181 = vadd.f32 %v179, %v180
    %v182 = vrot.slane %v181, 1
    %v183 = vadd.f32 %v181, %v182
    %v184 = vadd.f32 %v175, %v183
    %vm185 = vcmask 0
    %186 = vst.msk [vmem:[#allocation3] sm:$0x1] %vm185, %v184
    %v187 = vld [vmem:[#allocation4] sm:$0x1]
    %189 = vset.pattern.permute.xlu0 0
    %190 = vperm.xlu0 %189, %v164
    %v191 = vpop.permute.xlu0 %190
    %v193 = vlaneseq
    %v194 = vshrl.u32 %v193, 7
    %v195 = vsub.s32 0, %v194
    %v196 = vrot.slane %v191, %v195
    %v197 = vmul.f32 %v196, %v187
    %199 = vset.pattern.permute.xlu0 0
    %200 = vperm.xlu0 %199, %v173
    %v201 = vpop.permute.xlu0 %200
    %v203 = vmul.f32 %v201, %v49
    %v204 = vrot.slane %v203, 4
    %v205 = vadd.f32 %v203, %v204
    %v206 = vrot.slane %v205, 2
    %v207 = vadd.f32 %v205, %v206
    %v208 = vrot.slane %v207, 1
    %v209 = vadd.f32 %v207, %v208
    %v210 = vadd.f32 %v197, %v209
    %211 = vst [vmem:[#allocation4] sm:$0x1] %v210
    %212 = vst.msk [vmem:[#allocation2] sm:$0x1] %vm185, %v161
    // Predicated region
    $region26: #{tpu_custom_call.1} parent=1 // pred_check
      %p213 = pneg %p41
    $region27: #{tpu_custom_call.1} parent=1 // pred_check_branch
      %215 = sbr.rel (%p213) target = $region29
    $region28: #{tpu_custom_call.1} parent=1 // pred_region
      %v216 = vld [vmem:[#allocation3] sm:$0x1]
      %v217 = vrcp.pop %v216
      %v218 = vmul.f32 %v216, %v217
      %v219 = vsub.f32 2.0, %v218
      %v220 = vmul.f32 %v217, %v219
      %v221 = vld [vmem:[#allocation4] sm:$0x1]
      %223 = vset.pattern.permute.xlu0 0
      %224 = vperm.xlu0 %223, %v220
      %v225 = vpop.permute.xlu0 %224
      %v227 = vlaneseq
      %v228 = vshrl.u32 %v227, 7
      %v229 = vsub.s32 0, %v228
      %v230 = vrot.slane %v225, %v229
      %v231 = vmul.f32 %v221, %v230
      %232 = vst [vmem:[#allocation10] sm:$0x1] %v231
    $region29: #{tpu_custom_call.1} parent=1 // pred_fallthru
      _
    // Predicated region
    $region30: #{tpu_custom_call.1} parent=1 // pred_check
      _
    $region31: #{tpu_custom_call.1} parent=1 // pred_check_branch
      %234 = sbr.rel (0) target = $region33
    $region32: #{tpu_custom_call.1} parent=1 // pred_region
      %s236 = ssub.s32 16, 16
      %237 = vsyncadd [#allocation7], %s236
      %s239 = sshll.u32 [#allocation10], 4
      %s240 = int_to_ptr.vmem [resolvable:$true] %s239
      %242 = dma.vmem_to_hbm [thread:$0]  %s240, 16, %s3, [#allocation7]
    $region33: #{tpu_custom_call.1} parent=1 // pred_fallthru
      _
    // Predicated region
    $region34: #{tpu_custom_call.1} parent=1 // pred_check
      _
    $region35: #{tpu_custom_call.1} parent=1 // pred_check_branch
      %244 = sbr.rel (0) target = $region37
    $region36: #{tpu_custom_call.1} parent=1 // pred_region
      %245 = dma.done [#allocation7], 16
    $region37: #{tpu_custom_call.1} parent=1 // pred_fallthru
      _
    %246 = vsyncpa [#allocation6], 1
    %247 = vsyncpa [#allocation9], 1
    %248 = vsyncpa [#allocation7], 1

</llo_original>
